<compile_context>
chip_gen: v6e
topology: v6e:2x2x1
jax: 0.10.0
libtpu: 0.0.40
codegen_flags: <defaults>
</compile_context>

<pallas_src>
import jax
import jax.numpy as jnp
from jax.experimental import pallas as pl
from jax.experimental.pallas import tpu as pltpu

# Feature sizes of the torch module.
D_IN, D_H1, D_H2, D_OUT = 5, 6, 3, 1

# Packed-parameter slab layout: column L*_COL holds the layer bias, the next
# in_f columns hold the columns of W^T (rows 0..out_f-1 used).
SLAB_ROWS, SLAB_COLS = 8, 32
L1_COL, L2_COL, L3_COL = 0, 8, 16

# Max lane tile = 32 * 128 = 4096 batch columns per grid step (perf review
# recommended the 2048-8192 range; 4096 keeps padding waste modest).
MAX_LANE_TILES = 32


def _pick_tiling(batch):
    """Pick (lane-tile width TB, grid steps).

    TB is a multiple of 128 and capped at MAX_LANE_TILES*128.  The grid keeps
    >= 2 steps whenever there are >= 2 lane groups of work so v7x can shard
    the "parallel" axis over its two TensorCores.
    """
    tiles = pl.cdiv(batch, 128)                        # 128-sample lane groups
    steps = max(2 if tiles >= 2 else 1, pl.cdiv(tiles, MAX_LANE_TILES))
    tb = pl.cdiv(tiles, steps) * 128
    return tb, steps


def _layer(p, col, out_f, in_f, h):
    """y^T = W^T @ h + b as unrolled broadcast MACs (pure VPU, no MXU).

    p: (8, 32) packed parameter slab (values), h: (in_f, tb) feature-major
    activations.  f32 throughout.
    """
    tb = h.shape[1]
    acc = jnp.broadcast_to(p[0:out_f, col:col + 1], (out_f, tb))      # bias
    for k in range(in_f):                  # static unroll over tiny feature axis
        acc = acc + p[0:out_f, col + 1 + k:col + 2 + k] * h[k:k + 1, :]
    return acc


def mlp_kernel(x_ref, p_ref, o_ref):
    x = x_ref[...]                                # (D_IN, TB), batch on lanes
    p = p_ref[...]                                # (8, 32), VMEM resident
    h1 = jnp.maximum(_layer(p, L1_COL, D_H1, D_IN, x), 0.0)
    h2 = jnp.maximum(_layer(p, L2_COL, D_H2, D_H1, h1), 0.0)
    z3 = _layer(p, L3_COL, D_OUT, D_H2, h2)       # (1, TB)
    o_ref[...] = jax.nn.sigmoid(z3)               # exp + recip on the EUP


def _mlp_pallas(xt, slab, tb, steps):
    """Core pallas call.  xt: (D_IN, steps*tb) feature-major f32."""
    padded = xt.shape[1]
    return pl.pallas_call(
        mlp_kernel,
        out_shape=jax.ShapeDtypeStruct((D_OUT, padded), jnp.float32),
        grid=(steps,),
        in_specs=[
            # x tile: 5 contiguous row segments of tb*4 bytes each (multi-KiB
            # DMA bursts at large tb).  If profiling ever shows exposed input
            # DMA, add pipeline_mode=pl.Buffered(3) here.
            pl.BlockSpec((D_IN, tb), lambda i: (0, i)),
            # Packed weights/biases: constant index_map -> stays VMEM-resident
            # across grid steps (no re-DMA).
            pl.BlockSpec((SLAB_ROWS, SLAB_COLS), lambda i: (0, 0)),
        ],
        # Lane-dense (1, tb) output tile -> full unmasked stores, contiguous
        # writeback DMA.
        out_specs=pl.BlockSpec((D_OUT, tb), lambda i: (0, i)),
        compiler_params=pltpu.CompilerParams(
            dimension_semantics=("parallel",),    # v7x: shard tiles over 2 TCs
        ),
    )(xt, slab)


def _pack_params(w1, b1, w2, b2, w3, b3):
    """Pack (in,out) weights and (1,out) biases into one (8, 32) f32 slab."""
    f32 = jnp.float32
    slab = jnp.zeros((SLAB_ROWS, SLAB_COLS), f32)
    slab = slab.at[:D_H1, L1_COL:L1_COL + 1].set(b1.T.astype(f32))
    slab = slab.at[:D_H1, L1_COL + 1:L1_COL + 1 + D_IN].set(w1.T.astype(f32))
    slab = slab.at[:D_H2, L2_COL:L2_COL + 1].set(b2.T.astype(f32))
    slab = slab.at[:D_H2, L2_COL + 1:L2_COL + 1 + D_H1].set(w2.T.astype(f32))
    slab = slab.at[:D_OUT, L3_COL:L3_COL + 1].set(b3.T.astype(f32))
    slab = slab.at[:D_OUT, L3_COL + 1:L3_COL + 1 + D_H2].set(w3.T.astype(f32))
    return slab


@jax.jit
def nn_forward(x, w1, b1, w2, b2, w3, b3):
    """x: (batch, 5) f32; weights (in, out); biases (1, out) -> (batch, 1)."""
    batch = x.shape[0]
    tb, steps = _pick_tiling(batch)
    padded = tb * steps

    # Producer-side layout plumbing: one fused transpose+pad copy of x into
    # feature-major (5, padded).  Producers that can supply feature-major
    # input directly should call _mlp_pallas and skip this copy (it is the
    # only extra HBM round-trip of the input stream).
    xt = jnp.pad(x.T.astype(jnp.float32), ((0, 0), (0, padded - batch)))

    slab = _pack_params(w1, b1, w2, b2, w3, b3)
    out_t = _mlp_pallas(xt, slab, tb, steps)      # (1, padded)
    return out_t[:, :batch].T                     # (batch, 1)


def init_params(key):
    # Deterministic init mimicking torch.nn.Linear default:
    # U(-1/sqrt(fan_in), 1/sqrt(fan_in)) for weight and bias.
    ks = jax.random.split(key, 6)

    def lin(kw, kb, fan_in, fan_out):
        bound = 1.0 / jnp.sqrt(jnp.float32(fan_in))
        w = jax.random.uniform(kw, (fan_in, fan_out), jnp.float32, -bound, bound)
        b = jax.random.uniform(kb, (1, fan_out), jnp.float32, -bound, bound)
        return w, b

    w1, b1 = lin(ks[0], ks[1], D_IN, D_H1)
    w2, b2 = lin(ks[2], ks[3], D_H1, D_H2)
    w3, b3 = lin(ks[4], ks[5], D_H2, D_OUT)
    return w1, b1, w2, b2, w3, b3


def reference_forward(x, w1, b1, w2, b2, w3, b3):
    h1 = jnp.maximum(x @ w1 + b1, 0.0)
    h2 = jnp.maximum(h1 @ w2 + b2, 0.0)
    return jax.nn.sigmoid(h2 @ w3 + b3)


if __name__ == "__main__":
    key = jax.random.PRNGKey(0)
    k_x, k_x2, k_p = jax.random.split(key, 3)
    params = init_params(k_p)

    # Small batch, non-multiple of 128: exercises padding + a 2-step grid.
    batch = 200
    x = jax.random.normal(k_x, (batch, D_IN), dtype=jnp.float32)
    out = jax.block_until_ready(nn_forward(x, *params))
    ref = reference_forward(x, *params)
    assert out.shape == (batch, 1)
    assert jnp.allclose(out, ref, atol=1e-5, rtol=1e-5)

    # Slightly larger batch: exercises the adaptive (wider) lane tile path.
    batch2 = 1000
    x2 = jax.random.normal(k_x2, (batch2, D_IN), dtype=jnp.float32)
    out2 = jax.block_until_ready(nn_forward(x2, *params))
    ref2 = reference_forward(x2, *params)
    assert out2.shape == (batch2, 1)
    assert jnp.allclose(out2, ref2, atol=1e-5, rtol=1e-5)

    print("KERNEL_OK")
</pallas_src>

<mosaic_0001>
module attributes {stable_mosaic.version = 11 : i64} {
  func.func @mlp_kernel(%arg0: i32, %arg1: memref<5x128xf32, #tpu.memory_space<vmem>>, %arg2: memref<8x32xf32, #tpu.memory_space<vmem>>, %arg3: memref<1x128xf32, #tpu.memory_space<vmem>>) attributes {dimension_semantics = [#tpu.dimension_semantics<parallel>], iteration_bounds = array<i64: 2>, scalar_prefetch = 0 : i64, scratch_operands = 0 : i64, tpu.core_type = #tpu.core_type<tc>, window_params = [{transform_indices = @transform_0, window_bounds = array<i64: 5, 128>}, {pipeline_mode = #tpu.pipeline_mode<synchronous>, transform_indices = @transform_1, window_bounds = array<i64: 8, 32>}, {transform_indices = @transform_2, window_bounds = array<i64: 1, 128>}]} {
    %c0 = arith.constant 0 : index
    %c0_0 = arith.constant 0 : index
    %0 = vector.load %arg1[%c0, %c0_0] : memref<5x128xf32, #tpu.memory_space<vmem>>, vector<5x128xf32>
    %c0_1 = arith.constant 0 : index
    %c0_2 = arith.constant 0 : index
    %1 = vector.load %arg2[%c0_1, %c0_2] : memref<8x32xf32, #tpu.memory_space<vmem>>, vector<8x32xf32>
    %2 = vector.extract_strided_slice %1 {offsets = [0, 0], sizes = [6, 1], strides = [1, 1]} : vector<8x32xf32> to vector<6x1xf32>
    %3 = vector.shape_cast %2 : vector<6x1xf32> to vector<6x1xf32>
    %4 = vector.broadcast %3 : vector<6x1xf32> to vector<6x128xf32>
    %5 = vector.extract_strided_slice %1 {offsets = [0, 1], sizes = [6, 1], strides = [1, 1]} : vector<8x32xf32> to vector<6x1xf32>
    %6 = vector.extract_strided_slice %0 {offsets = [0, 0], sizes = [1, 128], strides = [1, 1]} : vector<5x128xf32> to vector<1x128xf32>
    %7 = vector.broadcast %5 : vector<6x1xf32> to vector<6x128xf32>
    %8 = vector.broadcast %6 : vector<1x128xf32> to vector<6x128xf32>
    %9 = arith.mulf %7, %8 : vector<6x128xf32>
    %10 = arith.addf %4, %9 : vector<6x128xf32>
    %11 = vector.extract_strided_slice %1 {offsets = [0, 2], sizes = [6, 1], strides = [1, 1]} : vector<8x32xf32> to vector<6x1xf32>
    %12 = vector.extract_strided_slice %0 {offsets = [1, 0], sizes = [1, 128], strides = [1, 1]} : vector<5x128xf32> to vector<1x128xf32>
    %13 = vector.broadcast %11 : vector<6x1xf32> to vector<6x128xf32>
    %14 = vector.broadcast %12 : vector<1x128xf32> to vector<6x128xf32>
    %15 = arith.mulf %13, %14 : vector<6x128xf32>
    %16 = arith.addf %10, %15 : vector<6x128xf32>
    %17 = vector.extract_strided_slice %1 {offsets = [0, 3], sizes = [6, 1], strides = [1, 1]} : vector<8x32xf32> to vector<6x1xf32>
    %18 = vector.extract_strided_slice %0 {offsets = [2, 0], sizes = [1, 128], strides = [1, 1]} : vector<5x128xf32> to vector<1x128xf32>
    %19 = vector.broadcast %17 : vector<6x1xf32> to vector<6x128xf32>
    %20 = vector.broadcast %18 : vector<1x128xf32> to vector<6x128xf32>
    %21 = arith.mulf %19, %20 : vector<6x128xf32>
    %22 = arith.addf %16, %21 : vector<6x128xf32>
    %23 = vector.extract_strided_slice %1 {offsets = [0, 4], sizes = [6, 1], strides = [1, 1]} : vector<8x32xf32> to vector<6x1xf32>
    %24 = vector.extract_strided_slice %0 {offsets = [3, 0], sizes = [1, 128], strides = [1, 1]} : vector<5x128xf32> to vector<1x128xf32>
    %25 = vector.broadcast %23 : vector<6x1xf32> to vector<6x128xf32>
    %26 = vector.broadcast %24 : vector<1x128xf32> to vector<6x128xf32>
    %27 = arith.mulf %25, %26 : vector<6x128xf32>
    %28 = arith.addf %22, %27 : vector<6x128xf32>
    %29 = vector.extract_strided_slice %1 {offsets = [0, 5], sizes = [6, 1], strides = [1, 1]} : vector<8x32xf32> to vector<6x1xf32>
    %30 = vector.extract_strided_slice %0 {offsets = [4, 0], sizes = [1, 128], strides = [1, 1]} : vector<5x128xf32> to vector<1x128xf32>
    %31 = vector.broadcast %29 : vector<6x1xf32> to vector<6x128xf32>
    %32 = vector.broadcast %30 : vector<1x128xf32> to vector<6x128xf32>
    %33 = arith.mulf %31, %32 : vector<6x128xf32>
    %34 = arith.addf %28, %33 : vector<6x128xf32>
    %cst = arith.constant 0.000000e+00 : f32
    %35 = vector.broadcast %cst : f32 to vector<6x128xf32>
    %36 = arith.maximumf %34, %35 : vector<6x128xf32>
    %37 = vector.extract_strided_slice %1 {offsets = [0, 8], sizes = [3, 1], strides = [1, 1]} : vector<8x32xf32> to vector<3x1xf32>
    %38 = vector.shape_cast %37 : vector<3x1xf32> to vector<3x1xf32>
    %39 = vector.broadcast %38 : vector<3x1xf32> to vector<3x128xf32>
    %40 = vector.extract_strided_slice %1 {offsets = [0, 9], sizes = [3, 1], strides = [1, 1]} : vector<8x32xf32> to vector<3x1xf32>
    %41 = vector.extract_strided_slice %36 {offsets = [0, 0], sizes = [1, 128], strides = [1, 1]} : vector<6x128xf32> to vector<1x128xf32>
    %42 = vector.broadcast %40 : vector<3x1xf32> to vector<3x128xf32>
    %43 = vector.broadcast %41 : vector<1x128xf32> to vector<3x128xf32>
    %44 = arith.mulf %42, %43 : vector<3x128xf32>
    %45 = arith.addf %39, %44 : vector<3x128xf32>
    %46 = vector.extract_strided_slice %1 {offsets = [0, 10], sizes = [3, 1], strides = [1, 1]} : vector<8x32xf32> to vector<3x1xf32>
    %47 = vector.extract_strided_slice %36 {offsets = [1, 0], sizes = [1, 128], strides = [1, 1]} : vector<6x128xf32> to vector<1x128xf32>
    %48 = vector.broadcast %46 : vector<3x1xf32> to vector<3x128xf32>
    %49 = vector.broadcast %47 : vector<1x128xf32> to vector<3x128xf32>
    %50 = arith.mulf %48, %49 : vector<3x128xf32>
    %51 = arith.addf %45, %50 : vector<3x128xf32>
    %52 = vector.extract_strided_slice %1 {offsets = [0, 11], sizes = [3, 1], strides = [1, 1]} : vector<8x32xf32> to vector<3x1xf32>
    %53 = vector.extract_strided_slice %36 {offsets = [2, 0], sizes = [1, 128], strides = [1, 1]} : vector<6x128xf32> to vector<1x128xf32>
    %54 = vector.broadcast %52 : vector<3x1xf32> to vector<3x128xf32>
    %55 = vector.broadcast %53 : vector<1x128xf32> to vector<3x128xf32>
    %56 = arith.mulf %54, %55 : vector<3x128xf32>
    %57 = arith.addf %51, %56 : vector<3x128xf32>
    %58 = vector.extract_strided_slice %1 {offsets = [0, 12], sizes = [3, 1], strides = [1, 1]} : vector<8x32xf32> to vector<3x1xf32>
    %59 = vector.extract_strided_slice %36 {offsets = [3, 0], sizes = [1, 128], strides = [1, 1]} : vector<6x128xf32> to vector<1x128xf32>
    %60 = vector.broadcast %58 : vector<3x1xf32> to vector<3x128xf32>
    %61 = vector.broadcast %59 : vector<1x128xf32> to vector<3x128xf32>
    %62 = arith.mulf %60, %61 : vector<3x128xf32>
    %63 = arith.addf %57, %62 : vector<3x128xf32>
    %64 = vector.extract_strided_slice %1 {offsets = [0, 13], sizes = [3, 1], strides = [1, 1]} : vector<8x32xf32> to vector<3x1xf32>
    %65 = vector.extract_strided_slice %36 {offsets = [4, 0], sizes = [1, 128], strides = [1, 1]} : vector<6x128xf32> to vector<1x128xf32>
    %66 = vector.broadcast %64 : vector<3x1xf32> to vector<3x128xf32>
    %67 = vector.broadcast %65 : vector<1x128xf32> to vector<3x128xf32>
    %68 = arith.mulf %66, %67 : vector<3x128xf32>
    %69 = arith.addf %63, %68 : vector<3x128xf32>
    %70 = vector.extract_strided_slice %1 {offsets = [0, 14], sizes = [3, 1], strides = [1, 1]} : vector<8x32xf32> to vector<3x1xf32>
    %71 = vector.extract_strided_slice %36 {offsets = [5, 0], sizes = [1, 128], strides = [1, 1]} : vector<6x128xf32> to vector<1x128xf32>
    %72 = vector.broadcast %70 : vector<3x1xf32> to vector<3x128xf32>
    %73 = vector.broadcast %71 : vector<1x128xf32> to vector<3x128xf32>
    %74 = arith.mulf %72, %73 : vector<3x128xf32>
    %75 = arith.addf %69, %74 : vector<3x128xf32>
    %cst_3 = arith.constant 0.000000e+00 : f32
    %76 = vector.broadcast %cst_3 : f32 to vector<3x128xf32>
    %77 = arith.maximumf %75, %76 : vector<3x128xf32>
    %78 = vector.extract_strided_slice %1 {offsets = [0, 16], sizes = [1, 1], strides = [1, 1]} : vector<8x32xf32> to vector<1x1xf32>
    %79 = vector.shape_cast %78 : vector<1x1xf32> to vector<1x1xf32>
    %80 = vector.broadcast %79 : vector<1x1xf32> to vector<1x128xf32>
    %81 = vector.extract_strided_slice %1 {offsets = [0, 17], sizes = [1, 1], strides = [1, 1]} : vector<8x32xf32> to vector<1x1xf32>
    %82 = vector.extract_strided_slice %77 {offsets = [0, 0], sizes = [1, 128], strides = [1, 1]} : vector<3x128xf32> to vector<1x128xf32>
    %83 = vector.broadcast %81 : vector<1x1xf32> to vector<1x128xf32>
    %84 = arith.mulf %83, %82 : vector<1x128xf32>
    %85 = arith.addf %80, %84 : vector<1x128xf32>
    %86 = vector.extract_strided_slice %1 {offsets = [0, 18], sizes = [1, 1], strides = [1, 1]} : vector<8x32xf32> to vector<1x1xf32>
    %87 = vector.extract_strided_slice %77 {offsets = [1, 0], sizes = [1, 128], strides = [1, 1]} : vector<3x128xf32> to vector<1x128xf32>
    %88 = vector.broadcast %86 : vector<1x1xf32> to vector<1x128xf32>
    %89 = arith.mulf %88, %87 : vector<1x128xf32>
    %90 = arith.addf %85, %89 : vector<1x128xf32>
    %91 = vector.extract_strided_slice %1 {offsets = [0, 19], sizes = [1, 1], strides = [1, 1]} : vector<8x32xf32> to vector<1x1xf32>
    %92 = vector.extract_strided_slice %77 {offsets = [2, 0], sizes = [1, 128], strides = [1, 1]} : vector<3x128xf32> to vector<1x128xf32>
    %93 = vector.broadcast %91 : vector<1x1xf32> to vector<1x128xf32>
    %94 = arith.mulf %93, %92 : vector<1x128xf32>
    %95 = arith.addf %90, %94 : vector<1x128xf32>
    %96 = arith.negf %95 : vector<1x128xf32>
    %97 = math.exp %96 : vector<1x128xf32>
    %cst_4 = arith.constant 1.000000e+00 : f32
    %98 = vector.broadcast %cst_4 : f32 to vector<1x128xf32>
    %99 = arith.addf %98, %97 : vector<1x128xf32>
    %100 = arith.divf %98, %99 : vector<1x128xf32>
    %c0_5 = arith.constant 0 : index
    %c0_6 = arith.constant 0 : index
    %101 = vector.load %arg3[%c0_5, %c0_6] : memref<1x128xf32, #tpu.memory_space<vmem>>, vector<1x128xf32>
    tpu.vector_store %arg3[%c0_5, %c0_6], %100 {strides = array<i32>} : memref<1x128xf32, #tpu.memory_space<vmem>>, vector<1x128xf32>,
    return
  }
  func.func @transform_0(%arg0: i32) -> (i32, i32) {
    %c0_i32 = arith.constant 0 : i32
    %c0_i32_0 = arith.constant 0 : i32
    return %c0_i32, %arg0 : i32, i32
  }
  func.func @transform_1(%arg0: i32) -> (i32, i32) {
    %c0_i32 = arith.constant 0 : i32
    %c0_i32_0 = arith.constant 0 : i32
    %c0_i32_1 = arith.constant 0 : i32
    return %c0_i32, %c0_i32_0 : i32, i32
  }
  func.func @transform_2(%arg0: i32) -> (i32, i32) {
    %c0_i32 = arith.constant 0 : i32
    %c0_i32_0 = arith.constant 0 : i32
    return %c0_i32, %arg0 : i32, i32
  }
}

</mosaic_0001>

<llo_original>
// kernel: nn_forward.1
$region0: #{nn_forward.1}
  #allocation0 [shape = 'u32[]', space=smem, size = 0x4, offset = 0x4, fixed_abs, tag = 'smem constant byte address 0x4 - core index']
  #allocation1 [shape = 'u32[144,128]{1,0:T(1,128)}', space=vmem, size = 0x12000, scoped, tag = 'internal scratch']
  %s0 = inlined_call_operand.vmem [shape: f32[5,256], index: 0, kind: input, shape index: {}]
  %s1 = inlined_call_operand.vmem [shape: f32[8,32], index: 1, kind: input, shape index: {}]
  %s2 = inlined_call_operand.vmem [shape: f32[1,256], index: 2, kind: output, shape index: {}]
  %s3 = sld [smem:[#allocation0]]
  $region41: #{nn_forward.1} parent=0
    _
  %s5 = ssub.s32 1, %s3
  %s6 = scalar_select 0, %s5, %s3
  loop: start=0, step=1, limit=4
  $region2: #{nn_forward.1} parent=0 // loop_pre_header
    _
  $region3: #{nn_forward.1} parent=0 // loop_header
    %s8 = sphi 0, %s12
    %p9 = scmp.ge.s32.totalorder %s8, 4
    %s18 = sphi 0, %s20
    %s21 = sphi 0, %s18
    %s22 = sphi 0, %s21
    %s38 = sphi 0, %s22
    %s42 = sphi 0, %s42
    %s44 = sphi 0, %s42
    %s45 = sphi 0, %s44
    %s59 = sphi 0, %s45
    %s65 = sphi 0, %s67
    %s68 = sphi 0, %s65
    %s69 = sphi 0, %s68
    %s85 = sphi 0, %s69
  $region4: #{nn_forward.1} parent=0 // loop_header_branch
    %11 = sbr.rel (%p9) target = $region8
  $region5: #{nn_forward.1} parent=0 // loop_body
    %s13 = ssub.s32 %s8, 1
    %s14 = ssub.s32 %s8, 2
    %s15 = sadd.s32 %s8, 1
    %s16 = ssub.s32 %s8, %s15
    %p17 = scmp.eq.s32.totalorder %s16, 0
    %s19 = sadd.s32 %s18, 1
    %s20 = scalar_select %p17, %s18, %s19
    %p23 = pneg %p17
    %p24 = scmp.eq.s32.totalorder %s8, 1
    %p25 = por %p23, %p24
    %p26 = scmp.ne.s32.totalorder %s18, %s21
    %p27 = scmp.eq.s32.totalorder %s8, 0
    %p28 = por %p26, %p27
    %p29 = scmp.ne.s32.totalorder %s18, %s21
    %p30 = scmp.eq.s32.totalorder %s13, 1
    %p31 = por %p29, %p30
    %p32 = scmp.ne.s32.totalorder %s21, %s22
    %p33 = scmp.eq.s32.totalorder %s13, 0
    %p34 = por %p32, %p33
    %p35 = scmp.ne.s32.totalorder %s21, %s22
    %p36 = scmp.eq.s32.totalorder %s14, 1
    %p37 = por %p35, %p36
    %p39 = scmp.ne.s32.totalorder %s22, %s38
    %p40 = scmp.eq.s32.totalorder %s14, 0
    %p41 = por %p39, %p40
    %s43 = sadd.s32 %s42, 1
    %p46 = scmp.eq.s32.totalorder %s8, 1
    %p47 = scmp.ne.s32.totalorder %s42, %s44
    %p48 = scmp.eq.s32.totalorder %s8, 0
    %p49 = por %p47, %p48
    %p50 = scmp.ne.s32.totalorder %s42, %s44
    %p51 = scmp.eq.s32.totalorder %s13, 1
    %p52 = por %p50, %p51
    %p53 = scmp.ne.s32.totalorder %s44, %s45
    %p54 = scmp.eq.s32.totalorder %s13, 0
    %p55 = por %p53, %p54
    %p56 = scmp.ne.s32.totalorder %s44, %s45
    %p57 = scmp.eq.s32.totalorder %s14, 1
    %p58 = por %p56, %p57
    %p60 = scmp.ne.s32.totalorder %s45, %s59
    %p61 = scmp.eq.s32.totalorder %s14, 0
    %p62 = por %p60, %p61
    %s63 = ssub.s32 %s8, %s15
    %p64 = scmp.eq.s32.totalorder %s63, 0
    %s66 = sadd.s32 %s65, 1
    %s67 = scalar_select %p64, %s65, %s66
    %p70 = pneg %p64
    %p71 = scmp.eq.s32.totalorder %s8, 1
    %p72 = por %p70, %p71
    %p73 = scmp.ne.s32.totalorder %s65, %s68
    %p74 = scmp.eq.s32.totalorder %s8, 0
    %p75 = por %p73, %p74
    %p76 = scmp.ne.s32.totalorder %s65, %s68
    %p77 = scmp.eq.s32.totalorder %s13, 1
    %p78 = por %p76, %p77
    %p79 = scmp.ne.s32.totalorder %s68, %s69
    %p80 = scmp.eq.s32.totalorder %s13, 0
    %p81 = por %p79, %p80
    %p82 = scmp.ne.s32.totalorder %s68, %s69
    %p83 = scmp.eq.s32.totalorder %s14, 1
    %p84 = por %p82, %p83
    %p86 = scmp.ne.s32.totalorder %s69, %s85
    %p87 = scmp.eq.s32.totalorder %s14, 0
    %p88 = por %p86, %p87
    %p89 = scmp.le.s32.totalorder 1, %s8
    %p90 = scmp.lt.s32.totalorder %s8, 3
    %p91 = pnand %p89, %p90
    %p92 = pneg %p91
    // Predicated region
    $region9: #{nn_forward.1} parent=5 // pred_check
      _
    $region10: #{nn_forward.1} parent=5 // pred_check_branch
      %94 = sbr.rel (%p91) target = $region12
    $region11: #{nn_forward.1} parent=5 // pred_region
      %s95 = ssub.s32 %s8, 1
      // Predicated region
      $region13: #{nn_forward.1} parent=11 // pred_check
        %p96 = pneg %p55
      $region14: #{nn_forward.1} parent=11 // pred_check_branch
        %98 = sbr.rel (%p96) target = $region16
      $region15: #{nn_forward.1} parent=11 // pred_region
        _
      $region16: #{nn_forward.1} parent=11 // pred_fallthru
        _
    $region12: #{nn_forward.1} parent=5 // pred_fallthru
      _
    %p99 = scmp.lt.s32.totalorder %s8, 2
    // Predicated region
    $region17: #{nn_forward.1} parent=5 // pred_check
      %p100 = pneg %p99
    $region18: #{nn_forward.1} parent=5 // pred_check_branch
      %102 = sbr.rel (%p100) target = $region20
    $region19: #{nn_forward.1} parent=5 // pred_region
      // Predicated region
      $region21: #{nn_forward.1} parent=19 // pred_check
        %p103 = pneg %p28
      $region22: #{nn_forward.1} parent=19 // pred_check_branch
        %105 = sbr.rel (%p103) target = $region24
      $region23: #{nn_forward.1} parent=19 // pred_region
        %p106 = scmp.lt.s32.totalorder %s8, 1
        %s107 = scalar_select %p106, %s8, 1
        %s108 = smul.addr %s107, 8
        %s109 = scalar_lea.vmem %s0, %s108
      $region24: #{nn_forward.1} parent=19 // pred_fallthru
        _
    $region20: #{nn_forward.1} parent=5 // pred_fallthru
      _
    %p110 = scmp.le.s32.totalorder 1, %s8
    %p111 = scmp.lt.s32.totalorder %s8, 3
    %p112 = pnand %p110, %p111
    %p113 = pneg %p112
    // Predicated region
    $region25: #{nn_forward.1} parent=5 // pred_check
      _
    $region26: #{nn_forward.1} parent=5 // pred_check_branch
      %115 = sbr.rel (%p112) target = $region28
    $region27: #{nn_forward.1} parent=5 // pred_region
      %s116 = ssub.s32 %s8, 1
      %p117 = scmp.lt.s32.totalorder %s13, 1
      %s118 = scalar_select %p117, %s13, 1
      %s119 = smul.addr %s118, 8
      %s120 = scalar_lea.vmem %s0, %s119
      %p121 = pneg %p34
      %p122 = pneg %p31
      %p123 = pneg %p55
      %p124 = pneg %p52
      %p125 = pneg %p81
      %p126 = pneg %p78
      %p127 = scmp.lt.s32.totalorder %s13, 1
      %s128 = scalar_select %p127, %s13, 1
      %s129 = scalar_lea.vmem %s2, %s128
      %p130 = scmp.lt.s32.totalorder %s13, 1
      %s131 = scalar_select %p130, %s13, 1
      %s132 = smul.addr %s131, 8
      %s133 = scalar_lea.vmem %s0, %s132
      %p134 = scmp.lt.s32.totalorder %s13, 1
      %s135 = scalar_select %p134, %s13, 1
      %s136 = scalar_lea.vmem %s2, %s135
      %v137 = vld [vmem:[%s133] sm:$0x1f]
      %v138 = vld [vmem:[%s1] sm:$0xff]
      %140 = vset.pattern.permute.xlu0 0
      %141 = vperm.xlu0 %140, %v138
      %v142 = vpop.permute.xlu0 %141
      %144 = vset.pattern.permute.xlu0 1
      %145 = vperm.xlu0 %144, %v138
      %v146 = vpop.permute.xlu0 %145
      %v148 = vlaneseq
      %v149 = vshrl.u32 %v148, 7
      %v150 = vsub.s32 0, %v149
      %v151 = vrot.slane %v137, %v150
      %v152 = vmul.f32 %v146, %v151
      %v153 = vadd.f32 %v142, %v152
      %154 = vset.pattern.permute.xlu0 2
      %155 = vperm.xlu0 %154, %v138
      %v156 = vpop.permute.xlu0 %155
      %v158 = vlaneseq
      %v159 = vshrl.u32 %v158, 7
      %v160 = vsub.s32 1, %v159
      %v161 = vrot.slane %v137, %v160
      %v162 = vmul.f32 %v156, %v161
      %v163 = vadd.f32 %v153, %v162
      %164 = vset.pattern.permute.xlu0 3
      %165 = vperm.xlu0 %164, %v138
      %v166 = vpop.permute.xlu0 %165
      %v168 = vlaneseq
      %v169 = vshrl.u32 %v168, 7
      %v170 = vsub.s32 2, %v169
      %v171 = vrot.slane %v137, %v170
      %v172 = vmul.f32 %v166, %v171
      %v173 = vadd.f32 %v163, %v172
      %174 = vset.pattern.permute.xlu0 4
      %175 = vperm.xlu0 %174, %v138
      %v176 = vpop.permute.xlu0 %175
      %v178 = vlaneseq
      %v179 = vshrl.u32 %v178, 7
      %v180 = vsub.s32 3, %v179
      %v181 = vrot.slane %v137, %v180
      %v182 = vmul.f32 %v176, %v181
      %v183 = vadd.f32 %v173, %v182
      %184 = vset.pattern.permute.xlu0 5
      %185 = vperm.xlu0 %184, %v138
      %v186 = vpop.permute.xlu0 %185
      %v188 = vlaneseq
      %v189 = vshrl.u32 %v188, 7
      %v190 = vsub.s32 4, %v189
      %v191 = vrot.slane %v137, %v190
      %v192 = vmul.f32 %v186, %v191
      %v193 = vadd.f32 %v183, %v192
      %v194 = vmax.f32 %v193, 0.0
      %195 = vset.pattern.permute.xlu0 8
      %196 = vperm.xlu0 %195, %v138
      %v197 = vpop.permute.xlu0 %196
      %199 = vset.pattern.permute.xlu0 9
      %200 = vperm.xlu0 %199, %v138
      %v201 = vpop.permute.xlu0 %200
      %v203 = vlaneseq
      %v204 = vshrl.u32 %v203, 7
      %v205 = vsub.s32 0, %v204
      %v206 = vrot.slane %v194, %v205
      %v207 = vmul.f32 %v201, %v206
      %v208 = vadd.f32 %v197, %v207
      %209 = vset.pattern.permute.xlu0 10
      %210 = vperm.xlu0 %209, %v138
      %v211 = vpop.permute.xlu0 %210
      %v213 = vlaneseq
      %v214 = vshrl.u32 %v213, 7
      %v215 = vsub.s32 1, %v214
      %v216 = vrot.slane %v194, %v215
      %v217 = vmul.f32 %v211, %v216
      %v218 = vadd.f32 %v208, %v217
      %219 = vset.pattern.permute.xlu0 11
      %220 = vperm.xlu0 %219, %v138
      %v221 = vpop.permute.xlu0 %220
      %v223 = vlaneseq
      %v224 = vshrl.u32 %v223, 7
      %v225 = vsub.s32 2, %v224
      %v226 = vrot.slane %v194, %v225
      %v227 = vmul.f32 %v221, %v226
      %v228 = vadd.f32 %v218, %v227
      %229 = vset.pattern.permute.xlu0 12
      %230 = vperm.xlu0 %229, %v138
      %v231 = vpop.permute.xlu0 %230
      %v233 = vlaneseq
      %v234 = vshrl.u32 %v233, 7
      %v235 = vsub.s32 3, %v234
      %v236 = vrot.slane %v194, %v235
      %v237 = vmul.f32 %v231, %v236
      %v238 = vadd.f32 %v228, %v237
      %239 = vset.pattern.permute.xlu0 13
      %240 = vperm.xlu0 %239, %v138
      %v241 = vpop.permute.xlu0 %240
      %v243 = vlaneseq
      %v244 = vshrl.u32 %v243, 7
      %v245 = vsub.s32 4, %v244
      %v246 = vrot.slane %v194, %v245
      %v247 = vmul.f32 %v241, %v246
      %v248 = vadd.f32 %v238, %v247
      %249 = vset.pattern.permute.xlu0 14
      %250 = vperm.xlu0 %249, %v138
      %v251 = vpop.permute.xlu0 %250
      %v253 = vlaneseq
      %v254 = vshrl.u32 %v253, 7
      %v255 = vsub.s32 5, %v254
      %v256 = vrot.slane %v194, %v255
      %v257 = vmul.f32 %v251, %v256
      %v258 = vadd.f32 %v248, %v257
      %v259 = vmax.f32 %v258, 0.0
      %260 = vset.pattern.permute.xlu0 16
      %261 = vperm.xlu0 %260, %v138
      %v262 = vpop.permute.xlu0 %261
      %264 = vset.pattern.permute.xlu0 17
      %265 = vperm.xlu0 %264, %v138
      %v266 = vpop.permute.xlu0 %265
      %v268 = vmul.f32 %v266, %v259
      %v269 = vadd.f32 %v262, %v268
      %270 = vset.pattern.permute.xlu0 18
      %271 = vperm.xlu0 %270, %v138
      %v272 = vpop.permute.xlu0 %271
      %v275 = vrot.slane %v259, 1
      %v277 = vmul.f32 %v272, %v275
      %v278 = vadd.f32 %v269, %v277
      %279 = vset.pattern.permute.xlu0 19
      %280 = vperm.xlu0 %279, %v138
      %v281 = vpop.permute.xlu0 %280
      %v283 = vrot.slane %v259, 2
      %v285 = vmul.f32 %v281, %v283
      %v286 = vadd.f32 %v278, %v285
      %v287 = vxor.u32 %v286, 2147483648
      %v288 = vmul.f32 %v287, 1.442695
      %v289 = vpow.pop %v288
      %v290 = vadd.f32 %v289, 1.0
      %v291 = vrcp.pop %v290
      %v292 = vmul.f32 1.0, %v291
      %293 = vst [vmem:[%s136] sm:$0x1] %v292
      %p294 = scmp.lt.s32.totalorder %s13, 1
      %s295 = scalar_select %p294, %s13, 1
      %s296 = scalar_lea.vmem %s2, %s295
      // Predicated region
      $region29: #{nn_forward.1} parent=27 // pred_check
        %p297 = pneg %p78
      $region30: #{nn_forward.1} parent=27 // pred_check_branch
        %299 = sbr.rel (%p297) target = $region32
      $region31: #{nn_forward.1} parent=27 // pred_region
        _
      $region32: #{nn_forward.1} parent=27 // pred_fallthru
        _
    $region28: #{nn_forward.1} parent=5 // pred_fallthru
      _
    %p300 = scmp.le.s32.totalorder 2, %s8
    // Predicated region
    $region33: #{nn_forward.1} parent=5 // pred_check
      %p301 = pneg %p300
    $region34: #{nn_forward.1} parent=5 // pred_check_branch
      %303 = sbr.rel (%p301) target = $region36
    $region35: #{nn_forward.1} parent=5 // pred_region
      %s304 = ssub.s32 %s8, 2
      // Predicated region
      $region37: #{nn_forward.1} parent=35 // pred_check
        %p305 = pneg %p84
      $region38: #{nn_forward.1} parent=35 // pred_check_branch
        %307 = sbr.rel (%p305) target = $region40
      $region39: #{nn_forward.1} parent=35 // pred_region
        %p308 = scmp.lt.s32.totalorder %s14, 1
        %s309 = scalar_select %p308, %s14, 1
        %s310 = scalar_lea.vmem %s2, %s309
      $region40: #{nn_forward.1} parent=35 // pred_fallthru
        _
    $region36: #{nn_forward.1} parent=5 // pred_fallthru
      _
  $region6: #{nn_forward.1} parent=0 // loop_footer
    %s12 = sadd.s32 1, %s8
  $region7: #{nn_forward.1} parent=0 // loop_footer_branch
    %7 = sbr.rel target = $region3
  $region8: #{nn_forward.1} parent=0 // loop_exit
    _

</llo_original>
